<compile_context>
chip_gen: v6e
topology: v6e:2x2x1
jax: 0.10.0
libtpu: 0.0.40
codegen_flags: <defaults>
</compile_context>

<pallas_src>
import functools

import jax
import jax.numpy as jnp
from jax import lax
from jax.experimental import pallas as pl
from jax.experimental.pallas import tpu as pltpu


def _make_fused_kernel(qp):
    """conv-as-one-matmul + folded-BN shift + ReLU + 2x2 maxpool (quadrant max)."""

    def kernel(lhs_ref, w_ref, shift_ref, o_ref):
        # Single MXU matmul per image: [4*qp, KKCp] x [KKCp, OCP] -> f32 acc.
        acc = jnp.dot(lhs_ref[0], w_ref[...],
                      preferred_element_type=jnp.float32)       # [4*qp, OCP]
        # Folded BatchNorm shift + ReLU (f32 epilogue; cheap on every gen).
        y = jnp.maximum(acc + shift_ref[...], 0.0)              # [4*qp, OCP]
        # 2x2 max-pool: rows were packed per pooling quadrant, so pooling is
        # three elementwise maxes over sublane-aligned [qp, OCP] slabs.
        pooled = jnp.maximum(
            jnp.maximum(y[0 * qp:1 * qp], y[1 * qp:2 * qp]),
            jnp.maximum(y[2 * qp:3 * qp], y[3 * qp:4 * qp]))
        o_ref[0] = pooled.astype(o_ref.dtype)                   # lane-dense store

    return kernel


@functools.partial(jax.jit, static_argnames=("ksize", "padding", "eps"))
def conv_2d_forward(x, weight, bias, gamma, beta, run_mean, run_var,
                    *, ksize=7, padding=1, eps=1e-5):
    """Forward pass of Conv_2d (eval mode). x: [N, C, H, W] float32 (NCHW)."""
    N, C, H, W = x.shape
    OC = weight.shape[0]
    K = ksize
    OH = H + 2 * padding - K + 1
    OW = W + 2 * padding - K + 1
    PH, PW = OH // 2, OW // 2            # MaxPool2d(2) floors odd extents
    KKC = K * K * C
    KKCp = pl.cdiv(KKC, 128) * 128       # lane-dense, MXU-filling contraction (196 -> 256)
    OCP = pl.cdiv(OC, 128) * 128         # lane-dense padded output channels
    QP = pl.cdiv(PH * PW, 8) * 8         # sublane-aligned rows per pooling quadrant

    # ---- wrapper-side layout plumbing (one-time, tiny arrays) ----------------
    # NCHW -> NHWC, bf16 once (no per-tap casts in the kernel), spatial zero-pad.
    xp = jnp.pad(jnp.transpose(x, (0, 2, 3, 1)).astype(jnp.bfloat16),
                 ((0, 0), (padding, padding), (padding, padding), (0, 0)))

    # im2col: lane axis = (kh, kw, c) -> contraction of K*K*C, padded to 256.
    taps = [xp[:, kh:kh + OH, kw:kw + OW, :]
            for kh in range(K) for kw in range(K)]              # each [N, OH, OW, C]
    patches = jnp.stack(taps, axis=3).reshape(N, OH, OW, KKC)
    patches = patches[:, :2 * PH, :2 * PW]                      # crop to pooled extent
    # Reorder rows by 2x2 pooling quadrant so the in-kernel pool is elementwise.
    q = patches.reshape(N, PH, 2, PW, 2, KKC)
    q = jnp.transpose(q, (0, 2, 4, 1, 3, 5)).reshape(N, 4, PH * PW, KKC)
    q = jnp.pad(q, ((0, 0), (0, 0), (0, QP - PH * PW), (0, KKCp - KKC)))
    lhs = q.reshape(N, 4 * QP, KKCp)                            # [N, 4*QP, 256] bf16

    # Fold conv bias + BatchNorm (running stats) into the weights / a shift row:
    #   BN(conv(x) + b) = x @ (W * scale) + (beta + (b - mean) * scale)
    scale = gamma / jnp.sqrt(run_var + eps)
    shift = beta + (bias - run_mean) * scale
    w_folded = weight * scale[:, None, None, None]                      # [OC, C, K, K]
    w_mat = jnp.transpose(w_folded, (2, 3, 1, 0)).reshape(KKC, OC)      # rows = (kh, kw, c)
    w_mat = jnp.pad(w_mat, ((0, KKCp - KKC), (0, OCP - OC))).astype(jnp.bfloat16)
    shift_row = jnp.pad(shift, (0, OCP - OC)).reshape(1, OCP).astype(jnp.float32)

    # ---- fused kernel: grid = (N,) -> one "parallel" step per image ----------
    out = pl.pallas_call(
        _make_fused_kernel(QP),
        out_shape=jax.ShapeDtypeStruct((N, QP, OCP), jnp.float32),
        grid=(N,),
        in_specs=[
            pl.BlockSpec((1, 4 * QP, KKCp), lambda n: (n, 0, 0)),   # per-image im2col slab
            pl.BlockSpec((KKCp, OCP), lambda n: (0, 0)),            # resident folded weights
            pl.BlockSpec((1, OCP), lambda n: (0, 0)),               # folded BN shift row
        ],
        out_specs=pl.BlockSpec((1, QP, OCP), lambda n: (n, 0, 0)),
        compiler_params=pltpu.CompilerParams(
            dimension_semantics=("parallel",)),
    )(lhs, w_mat, shift_row)

    # Drop row / channel padding, back to NCHW.
    # TODO(synk): Dropout is identity (eval mode); train-mode stochastic masking
    # and batch-stat BatchNorm are not applied (inference semantics).
    pooled = out[:, :PH * PW, :OC].reshape(N, PH, PW, OC)
    return jnp.transpose(pooled, (0, 3, 1, 2))


def _reference_forward(x, weight, bias, gamma, beta, run_mean, run_var,
                       *, padding=1, eps=1e-5):
    """Pure-JAX reference (eval mode) for correctness checking."""
    y = lax.conv_general_dilated(
        x, weight, window_strides=(1, 1),
        padding=((padding, padding), (padding, padding)),
        dimension_numbers=('NCHW', 'OIHW', 'NCHW'))
    y = y + bias.reshape(1, -1, 1, 1)
    y = (y - run_mean.reshape(1, -1, 1, 1)) / jnp.sqrt(run_var.reshape(1, -1, 1, 1) + eps)
    y = y * gamma.reshape(1, -1, 1, 1) + beta.reshape(1, -1, 1, 1)
    y = jnp.maximum(y, 0.0)
    y = lax.reduce_window(y, -jnp.inf, lax.max,
                          window_dimensions=(1, 1, 2, 2),
                          window_strides=(1, 1, 2, 2),
                          padding='VALID')
    return y


if __name__ == "__main__":
    # Small shapes consistent with the module: batch=2, C_in=4, C_out=8, H=W=16, k=7.
    N, CIN, COUT, H, W, K = 2, 4, 8, 16, 16, 7

    key = jax.random.PRNGKey(0)
    kx, kwt, kb = jax.random.split(key, 3)

    x = jax.random.normal(kx, (N, CIN, H, W), dtype=jnp.float32)

    # Deterministic parameter init (synthetic, not a checkpoint load).
    weight = 0.05 * jax.random.normal(kwt, (COUT, CIN, K, K), dtype=jnp.float32)
    bias = 0.1 * jax.random.normal(kb, (COUT,), dtype=jnp.float32)
    gamma = 1.0 + 0.1 * jnp.arange(COUT, dtype=jnp.float32)
    beta = 0.05 * jnp.arange(COUT, dtype=jnp.float32)
    run_mean = 0.01 * jnp.arange(COUT, dtype=jnp.float32)
    run_var = 1.0 + 0.1 * jnp.arange(COUT, dtype=jnp.float32)

    out = conv_2d_forward(x, weight, bias, gamma, beta, run_mean, run_var,
                          ksize=K, padding=1)
    out = jax.block_until_ready(out)

    ref = _reference_forward(x, weight, bias, gamma, beta, run_mean, run_var,
                             padding=1)
    ref = jax.block_until_ready(ref)

    assert out.shape == (N, COUT, (H + 2 - K + 1) // 2, (W + 2 - K + 1) // 2), out.shape
    err = jnp.max(jnp.abs(out - ref))
    assert jnp.allclose(out, ref, rtol=2e-2, atol=2e-2), f"max abs err = {err}"

    print("KERNEL_OK")
</pallas_src>

<mosaic_0001>
module attributes {stable_mosaic.version = 11 : i64} {
  func.func @kernel(%arg0: i32, %arg1: memref<1x160x256xbf16, #tpu.memory_space<vmem>>, %arg2: memref<256x128xbf16, #tpu.memory_space<vmem>>, %arg3: memref<1x128xf32, #tpu.memory_space<vmem>>, %arg4: memref<1x40x128xf32, #tpu.memory_space<vmem>>) attributes {dimension_semantics = [#tpu.dimension_semantics<parallel>], iteration_bounds = array<i64: 2>, scalar_prefetch = 0 : i64, scratch_operands = 0 : i64, tpu.core_type = #tpu.core_type<tc>, window_params = [{transform_indices = @transform_0, window_bounds = array<i64: 1, 160, 256>}, {pipeline_mode = #tpu.pipeline_mode<synchronous>, transform_indices = @transform_1, window_bounds = array<i64: 256, 128>}, {pipeline_mode = #tpu.pipeline_mode<synchronous>, transform_indices = @transform_2, window_bounds = array<i64: 1, 128>}, {transform_indices = @transform_3, window_bounds = array<i64: 1, 40, 128>}]} {
    %c0 = arith.constant 0 : index
    %c0_0 = arith.constant 0 : index
    %c0_1 = arith.constant 0 : index
    %0 = vector.load %arg1[%c0, %c0_0, %c0_1] : memref<1x160x256xbf16, #tpu.memory_space<vmem>>, vector<1x160x256xbf16>
    %1 = vector.shape_cast %0 : vector<1x160x256xbf16> to vector<160x256xbf16>
    %c0_2 = arith.constant 0 : index
    %c0_3 = arith.constant 0 : index
    %2 = vector.load %arg2[%c0_2, %c0_3] : memref<256x128xbf16, #tpu.memory_space<vmem>>, vector<256x128xbf16>
    %cst = arith.constant dense<0.000000e+00> : vector<160x128xf32>
    %3 = tpu.matmul %1, %2, %cst {dimension_numbers = #tpu.dot_dimension_numbers<[1], [0], [0], [1], [0, 0, 1, 1], [], []>} : vector<160x256xbf16>, vector<256x128xbf16>, vector<160x128xf32> -> vector<160x128xf32>
    %c0_4 = arith.constant 0 : index
    %c0_5 = arith.constant 0 : index
    %4 = vector.load %arg3[%c0_4, %c0_5] : memref<1x128xf32, #tpu.memory_space<vmem>>, vector<1x128xf32>
    %5 = vector.broadcast %4 : vector<1x128xf32> to vector<160x128xf32>
    %6 = arith.addf %3, %5 : vector<160x128xf32>
    %cst_6 = arith.constant 0.000000e+00 : f32
    %7 = vector.broadcast %cst_6 : f32 to vector<160x128xf32>
    %8 = arith.maximumf %6, %7 : vector<160x128xf32>
    %9 = vector.extract_strided_slice %8 {offsets = [0, 0], sizes = [40, 128], strides = [1, 1]} : vector<160x128xf32> to vector<40x128xf32>
    %10 = vector.extract_strided_slice %8 {offsets = [40, 0], sizes = [40, 128], strides = [1, 1]} : vector<160x128xf32> to vector<40x128xf32>
    %11 = arith.maximumf %9, %10 : vector<40x128xf32>
    %12 = vector.extract_strided_slice %8 {offsets = [80, 0], sizes = [40, 128], strides = [1, 1]} : vector<160x128xf32> to vector<40x128xf32>
    %13 = vector.extract_strided_slice %8 {offsets = [120, 0], sizes = [40, 128], strides = [1, 1]} : vector<160x128xf32> to vector<40x128xf32>
    %14 = arith.maximumf %12, %13 : vector<40x128xf32>
    %15 = arith.maximumf %11, %14 : vector<40x128xf32>
    %c0_7 = arith.constant 0 : index
    %c0_8 = arith.constant 0 : index
    %c0_9 = arith.constant 0 : index
    %16 = vector.load %arg4[%c0_7, %c0_8, %c0_9] : memref<1x40x128xf32, #tpu.memory_space<vmem>>, vector<1x40x128xf32>
    %17 = vector.shape_cast %16 : vector<1x40x128xf32> to vector<40x128xf32>
    %18 = vector.shape_cast %15 : vector<40x128xf32> to vector<1x40x128xf32>
    tpu.vector_store %arg4[%c0_7, %c0_8, %c0_9], %18 {strides = array<i32>} : memref<1x40x128xf32, #tpu.memory_space<vmem>>, vector<1x40x128xf32>,
    return
  }
  func.func @transform_0(%arg0: i32) -> (i32, i32, i32) {
    %c0_i32 = arith.constant 0 : i32
    %c0_i32_0 = arith.constant 0 : i32
    %c0_i32_1 = arith.constant 0 : i32
    return %arg0, %c0_i32, %c0_i32_0 : i32, i32, i32
  }
  func.func @transform_1(%arg0: i32) -> (i32, i32) {
    %c0_i32 = arith.constant 0 : i32
    %c0_i32_0 = arith.constant 0 : i32
    %c0_i32_1 = arith.constant 0 : i32
    return %c0_i32, %c0_i32_0 : i32, i32
  }
  func.func @transform_2(%arg0: i32) -> (i32, i32) {
    %c0_i32 = arith.constant 0 : i32
    %c0_i32_0 = arith.constant 0 : i32
    %c0_i32_1 = arith.constant 0 : i32
    return %c0_i32, %c0_i32_0 : i32, i32
  }
  func.func @transform_3(%arg0: i32) -> (i32, i32, i32) {
    %c0_i32 = arith.constant 0 : i32
    %c0_i32_0 = arith.constant 0 : i32
    %c0_i32_1 = arith.constant 0 : i32
    return %arg0, %c0_i32, %c0_i32_0 : i32, i32, i32
  }
}

</mosaic_0001>

<llo_original>
// kernel: conv_2d_forward.1
$region0: #{conv_2d_forward.1}
  #allocation0 [shape = 'u32[]', space=smem, size = 0x4, offset = 0x4, fixed_abs, tag = 'smem constant byte address 0x4 - core index']
  #allocation1 [shape = 'u32[144,128]{1,0:T(1,128)}', space=vmem, size = 0x12000, scoped, tag = 'internal scratch']
  %s0 = inlined_call_operand.vmem [shape: bf16[2,160,256], index: 0, kind: input, shape index: {}]
  %s1 = inlined_call_operand.vmem [shape: bf16[256,128], index: 1, kind: input, shape index: {}]
  %s2 = inlined_call_operand.vmem [shape: f32[1,128], index: 2, kind: input, shape index: {}]
  %s3 = inlined_call_operand.vmem [shape: f32[2,40,128], index: 3, kind: output, shape index: {}]
  %s4 = sld [smem:[#allocation0]]
  $region45: #{conv_2d_forward.1} parent=0
    _
  %s6 = ssub.s32 1, %s4
  %s7 = scalar_select 0, %s6, %s4
  loop: start=0, step=1, limit=4
  $region2: #{conv_2d_forward.1} parent=0 // loop_pre_header
    _
  $region3: #{conv_2d_forward.1} parent=0 // loop_header
    %s9 = sphi 0, %s13
    %p10 = scmp.ge.s32.totalorder %s9, 4
    %s19 = sphi 0, %s21
    %s22 = sphi 0, %s19
    %s23 = sphi 0, %s22
    %s39 = sphi 0, %s23
    %s43 = sphi 0, %s43
    %s45 = sphi 0, %s43
    %s46 = sphi 0, %s45
    %s60 = sphi 0, %s46
    %s64 = sphi 0, %s64
    %s66 = sphi 0, %s64
    %s67 = sphi 0, %s66
    %s81 = sphi 0, %s67
    %s87 = sphi 0, %s89
    %s90 = sphi 0, %s87
    %s91 = sphi 0, %s90
    %s107 = sphi 0, %s91
  $region4: #{conv_2d_forward.1} parent=0 // loop_header_branch
    %12 = sbr.rel (%p10) target = $region8
  $region5: #{conv_2d_forward.1} parent=0 // loop_body
    %s14 = ssub.s32 %s9, 1
    %s15 = ssub.s32 %s9, 2
    %s16 = sadd.s32 %s9, 1
    %s17 = ssub.s32 %s9, %s16
    %p18 = scmp.eq.s32.totalorder %s17, 0
    %s20 = sadd.s32 %s19, 1
    %s21 = scalar_select %p18, %s19, %s20
    %p24 = pneg %p18
    %p25 = scmp.eq.s32.totalorder %s9, 1
    %p26 = por %p24, %p25
    %p27 = scmp.ne.s32.totalorder %s19, %s22
    %p28 = scmp.eq.s32.totalorder %s9, 0
    %p29 = por %p27, %p28
    %p30 = scmp.ne.s32.totalorder %s19, %s22
    %p31 = scmp.eq.s32.totalorder %s14, 1
    %p32 = por %p30, %p31
    %p33 = scmp.ne.s32.totalorder %s22, %s23
    %p34 = scmp.eq.s32.totalorder %s14, 0
    %p35 = por %p33, %p34
    %p36 = scmp.ne.s32.totalorder %s22, %s23
    %p37 = scmp.eq.s32.totalorder %s15, 1
    %p38 = por %p36, %p37
    %p40 = scmp.ne.s32.totalorder %s23, %s39
    %p41 = scmp.eq.s32.totalorder %s15, 0
    %p42 = por %p40, %p41
    %s44 = sadd.s32 %s43, 1
    %p47 = scmp.eq.s32.totalorder %s9, 1
    %p48 = scmp.ne.s32.totalorder %s43, %s45
    %p49 = scmp.eq.s32.totalorder %s9, 0
    %p50 = por %p48, %p49
    %p51 = scmp.ne.s32.totalorder %s43, %s45
    %p52 = scmp.eq.s32.totalorder %s14, 1
    %p53 = por %p51, %p52
    %p54 = scmp.ne.s32.totalorder %s45, %s46
    %p55 = scmp.eq.s32.totalorder %s14, 0
    %p56 = por %p54, %p55
    %p57 = scmp.ne.s32.totalorder %s45, %s46
    %p58 = scmp.eq.s32.totalorder %s15, 1
    %p59 = por %p57, %p58
    %p61 = scmp.ne.s32.totalorder %s46, %s60
    %p62 = scmp.eq.s32.totalorder %s15, 0
    %p63 = por %p61, %p62
    %s65 = sadd.s32 %s64, 1
    %p68 = scmp.eq.s32.totalorder %s9, 1
    %p69 = scmp.ne.s32.totalorder %s64, %s66
    %p70 = scmp.eq.s32.totalorder %s9, 0
    %p71 = por %p69, %p70
    %p72 = scmp.ne.s32.totalorder %s64, %s66
    %p73 = scmp.eq.s32.totalorder %s14, 1
    %p74 = por %p72, %p73
    %p75 = scmp.ne.s32.totalorder %s66, %s67
    %p76 = scmp.eq.s32.totalorder %s14, 0
    %p77 = por %p75, %p76
    %p78 = scmp.ne.s32.totalorder %s66, %s67
    %p79 = scmp.eq.s32.totalorder %s15, 1
    %p80 = por %p78, %p79
    %p82 = scmp.ne.s32.totalorder %s67, %s81
    %p83 = scmp.eq.s32.totalorder %s15, 0
    %p84 = por %p82, %p83
    %s85 = ssub.s32 %s9, %s16
    %p86 = scmp.eq.s32.totalorder %s85, 0
    %s88 = sadd.s32 %s87, 1
    %s89 = scalar_select %p86, %s87, %s88
    %p92 = pneg %p86
    %p93 = scmp.eq.s32.totalorder %s9, 1
    %p94 = por %p92, %p93
    %p95 = scmp.ne.s32.totalorder %s87, %s90
    %p96 = scmp.eq.s32.totalorder %s9, 0
    %p97 = por %p95, %p96
    %p98 = scmp.ne.s32.totalorder %s87, %s90
    %p99 = scmp.eq.s32.totalorder %s14, 1
    %p100 = por %p98, %p99
    %p101 = scmp.ne.s32.totalorder %s90, %s91
    %p102 = scmp.eq.s32.totalorder %s14, 0
    %p103 = por %p101, %p102
    %p104 = scmp.ne.s32.totalorder %s90, %s91
    %p105 = scmp.eq.s32.totalorder %s15, 1
    %p106 = por %p104, %p105
    %p108 = scmp.ne.s32.totalorder %s91, %s107
    %p109 = scmp.eq.s32.totalorder %s15, 0
    %p110 = por %p108, %p109
    %p111 = scmp.le.s32.totalorder 1, %s9
    %p112 = scmp.lt.s32.totalorder %s9, 3
    %p113 = pnand %p111, %p112
    %p114 = pneg %p113
    // Predicated region
    $region9: #{conv_2d_forward.1} parent=5 // pred_check
      _
    $region10: #{conv_2d_forward.1} parent=5 // pred_check_branch
      %116 = sbr.rel (%p113) target = $region12
    $region11: #{conv_2d_forward.1} parent=5 // pred_region
      %s117 = ssub.s32 %s9, 1
      // Predicated region
      $region13: #{conv_2d_forward.1} parent=11 // pred_check
        %p118 = pneg %p56
      $region14: #{conv_2d_forward.1} parent=11 // pred_check_branch
        %120 = sbr.rel (%p118) target = $region16
      $region15: #{conv_2d_forward.1} parent=11 // pred_region
        _
      $region16: #{conv_2d_forward.1} parent=11 // pred_fallthru
        _
      // Predicated region
      $region17: #{conv_2d_forward.1} parent=11 // pred_check
        %p121 = pneg %p77
      $region18: #{conv_2d_forward.1} parent=11 // pred_check_branch
        %123 = sbr.rel (%p121) target = $region20
      $region19: #{conv_2d_forward.1} parent=11 // pred_region
        _
      $region20: #{conv_2d_forward.1} parent=11 // pred_fallthru
        _
    $region12: #{conv_2d_forward.1} parent=5 // pred_fallthru
      _
    %p124 = scmp.lt.s32.totalorder %s9, 2
    // Predicated region
    $region21: #{conv_2d_forward.1} parent=5 // pred_check
      %p125 = pneg %p124
    $region22: #{conv_2d_forward.1} parent=5 // pred_check_branch
      %127 = sbr.rel (%p125) target = $region24
    $region23: #{conv_2d_forward.1} parent=5 // pred_region
      // Predicated region
      $region25: #{conv_2d_forward.1} parent=23 // pred_check
        %p128 = pneg %p29
      $region26: #{conv_2d_forward.1} parent=23 // pred_check_branch
        %130 = sbr.rel (%p128) target = $region28
      $region27: #{conv_2d_forward.1} parent=23 // pred_region
        %p131 = scmp.lt.s32.totalorder %s9, 1
        %s132 = scalar_select %p131, %s9, 1
        %s133 = smul.addr %s132, 40
        %s134 = smul.addr %s133, 4
        %s135 = scalar_lea.vmem %s0, %s134
      $region28: #{conv_2d_forward.1} parent=23 // pred_fallthru
        _
    $region24: #{conv_2d_forward.1} parent=5 // pred_fallthru
      _
    %p136 = scmp.le.s32.totalorder 1, %s9
    %p137 = scmp.lt.s32.totalorder %s9, 3
    %p138 = pnand %p136, %p137
    %p139 = pneg %p138
    // Predicated region
    $region29: #{conv_2d_forward.1} parent=5 // pred_check
      _
    $region30: #{conv_2d_forward.1} parent=5 // pred_check_branch
      %141 = sbr.rel (%p138) target = $region32
    $region31: #{conv_2d_forward.1} parent=5 // pred_region
      %s142 = ssub.s32 %s9, 1
      %p143 = scmp.lt.s32.totalorder %s14, 1
      %s144 = scalar_select %p143, %s14, 1
      %s145 = smul.addr %s144, 40
      %s146 = smul.addr %s145, 4
      %s147 = scalar_lea.vmem %s0, %s146
      %p148 = pneg %p35
      %p149 = pneg %p32
      %p150 = pneg %p56
      %p151 = pneg %p53
      %p152 = pneg %p77
      %p153 = pneg %p74
      %p154 = pneg %p103
      %p155 = pneg %p100
      %p156 = scmp.lt.s32.totalorder %s14, 1
      %s157 = scalar_select %p156, %s14, 1
      %s158 = smul.addr %s157, 5
      %s159 = smul.addr %s158, 8
      %s160 = scalar_lea.vmem %s3, %s159
      %p161 = scmp.lt.s32.totalorder %s14, 1
      %s162 = scalar_select %p161, %s14, 1
      %s163 = smul.addr %s162, 40
      %s164 = smul.addr %s163, 4
      %s165 = scalar_lea.vmem %s0, %s164
      %p166 = scmp.lt.s32.totalorder %s14, 1
      %s167 = scalar_select %p166, %s14, 1
      %s168 = smul.addr %s167, 5
      %s169 = smul.addr %s168, 8
      %s170 = scalar_lea.vmem %s3, %s169
      %v172 = vld [vmem:[%s165] sm:$0xff]
      %v173 = vld [vmem:[%s165 + $0x8] sm:$0xff]
      %v174 = vld [vmem:[%s165 + $0x10] sm:$0xff]
      %v175 = vld [vmem:[%s165 + $0x18] sm:$0xff]
      %v176 = vld [vmem:[%s165 + $0x20] sm:$0xff]
      %v177 = vld [vmem:[%s165 + $0x28] sm:$0xff]
      %v178 = vld [vmem:[%s165 + $0x30] sm:$0xff]
      %v179 = vld [vmem:[%s165 + $0x38] sm:$0xff]
      %v180 = vld [vmem:[%s165 + $0x40] sm:$0xff]
      %v181 = vld [vmem:[%s165 + $0x48] sm:$0xff]
      %v182 = vld [vmem:[%s165 + $0x50] sm:$0xff]
      %v183 = vld [vmem:[%s165 + $0x58] sm:$0xff]
      %v184 = vld [vmem:[%s165 + $0x60] sm:$0xff]
      %v185 = vld [vmem:[%s165 + $0x68] sm:$0xff]
      %v186 = vld [vmem:[%s165 + $0x70] sm:$0xff]
      %v187 = vld [vmem:[%s165 + $0x78] sm:$0xff]
      %v188 = vld [vmem:[%s165 + $0x80] sm:$0xff]
      %v189 = vld [vmem:[%s165 + $0x88] sm:$0xff]
      %v190 = vld [vmem:[%s165 + $0x90] sm:$0xff]
      %v191 = vld [vmem:[%s165 + $0x98] sm:$0xff]
      %v192 = vld [vmem:[%s1] sm:$0xf]
      %v193 = vld [vmem:[%s1 + $0x4] sm:$0xf]
      %v194 = vld [vmem:[%s1 + $0x8] sm:$0xf]
      %v195 = vld [vmem:[%s1 + $0xc] sm:$0xf]
      %v196 = vld [vmem:[%s1 + $0x10] sm:$0xf]
      %v197 = vld [vmem:[%s1 + $0x14] sm:$0xf]
      %v198 = vld [vmem:[%s1 + $0x18] sm:$0xf]
      %v199 = vld [vmem:[%s1 + $0x1c] sm:$0xf]
      %v200 = vld [vmem:[%s1 + $0x20] sm:$0xf]
      %v201 = vld [vmem:[%s1 + $0x24] sm:$0xf]
      %v202 = vld [vmem:[%s1 + $0x28] sm:$0xf]
      %v203 = vld [vmem:[%s1 + $0x2c] sm:$0xf]
      %v204 = vld [vmem:[%s1 + $0x30] sm:$0xf]
      %v205 = vld [vmem:[%s1 + $0x34] sm:$0xf]
      %v206 = vld [vmem:[%s1 + $0x38] sm:$0xf]
      %v207 = vld [vmem:[%s1 + $0x3c] sm:$0xf]
      %v208 = vld [vmem:[%s1 + $0x40] sm:$0xf]
      %v209 = vld [vmem:[%s1 + $0x44] sm:$0xf]
      %v210 = vld [vmem:[%s1 + $0x48] sm:$0xf]
      %v211 = vld [vmem:[%s1 + $0x4c] sm:$0xf]
      %v212 = vld [vmem:[%s1 + $0x50] sm:$0xf]
      %v213 = vld [vmem:[%s1 + $0x54] sm:$0xf]
      %v214 = vld [vmem:[%s1 + $0x58] sm:$0xf]
      %v215 = vld [vmem:[%s1 + $0x5c] sm:$0xf]
      %v216 = vld [vmem:[%s1 + $0x60] sm:$0xf]
      %v217 = vld [vmem:[%s1 + $0x64] sm:$0xf]
      %v218 = vld [vmem:[%s1 + $0x68] sm:$0xf]
      %v219 = vld [vmem:[%s1 + $0x6c] sm:$0xf]
      %v220 = vld [vmem:[%s1 + $0x70] sm:$0xf]
      %v221 = vld [vmem:[%s1 + $0x74] sm:$0xf]
      %v222 = vld [vmem:[%s1 + $0x78] sm:$0xf]
      %v223 = vld [vmem:[%s1 + $0x7c] sm:$0xf]
      %v224 = vld [vmem:[%s2] sm:$0x1]
      %v226 = vlaneseq
      %v227 = vshrl.u32 %v226, 7
      %v228 = vsub.s32 0, %v227
      %v229 = vrot.slane %v224, %v228
      %v251 = vunpack.c.l.b16 %v172
      %v252 = vunpack.c.h.b16 %v172
      %v253 = vunpack.c.l.b16 %v173
      %v254 = vunpack.c.h.b16 %v173
      %v255 = vunpack.c.l.b16 %v174
      %v256 = vunpack.c.h.b16 %v174
      %v257 = vunpack.c.l.b16 %v175
      %v258 = vunpack.c.h.b16 %v175
      %v259 = vunpack.c.l.b16 %v176
      %v260 = vunpack.c.h.b16 %v176
      %v261 = vunpack.c.l.b16 %v177
      %v262 = vunpack.c.h.b16 %v177
      %v263 = vunpack.c.l.b16 %v178
      %v264 = vunpack.c.h.b16 %v178
      %v265 = vunpack.c.l.b16 %v179
      %v266 = vunpack.c.h.b16 %v179
      %v267 = vunpack.c.l.b16 %v180
      %v268 = vunpack.c.h.b16 %v180
      %v269 = vunpack.c.l.b16 %v181
      %v270 = vunpack.c.h.b16 %v181
      %v271 = vunpack.c.l.b16 %v182
      %v272 = vunpack.c.h.b16 %v182
      %v273 = vunpack.c.l.b16 %v183
      %v274 = vunpack.c.h.b16 %v183
      %v275 = vunpack.c.l.b16 %v184
      %v276 = vunpack.c.h.b16 %v184
      %v277 = vunpack.c.l.b16 %v185
      %v278 = vunpack.c.h.b16 %v185
      %v279 = vunpack.c.l.b16 %v186
      %v280 = vunpack.c.h.b16 %v186
      %v281 = vunpack.c.l.b16 %v187
      %v282 = vunpack.c.h.b16 %v187
      %v283 = vunpack.c.l.b16 %v188
      %v284 = vunpack.c.h.b16 %v188
      %v285 = vunpack.c.l.b16 %v189
      %v286 = vunpack.c.h.b16 %v189
      %v287 = vunpack.c.l.b16 %v190
      %v288 = vunpack.c.h.b16 %v190
      %v289 = vunpack.c.l.b16 %v191
      %v290 = vunpack.c.h.b16 %v191
      %v291 = vpack.c.b16 %v253, %v251
      %v292 = vpack.c.b16 %v254, %v252
      %v293 = vpack.c.b16 %v257, %v255
      %v294 = vpack.c.b16 %v258, %v256
      %v295 = vpack.c.b16 %v261, %v259
      %v296 = vpack.c.b16 %v262, %v260
      %v297 = vpack.c.b16 %v265, %v263
      %v298 = vpack.c.b16 %v266, %v264
      %v299 = vpack.c.b16 %v269, %v267
      %v300 = vpack.c.b16 %v270, %v268
      %v301 = vpack.c.b16 %v273, %v271
      %v302 = vpack.c.b16 %v274, %v272
      %v303 = vpack.c.b16 %v277, %v275
      %v304 = vpack.c.b16 %v278, %v276
      %v305 = vpack.c.b16 %v281, %v279
      %v306 = vpack.c.b16 %v282, %v280
      %v307 = vpack.c.b16 %v285, %v283
      %v308 = vpack.c.b16 %v286, %v284
      %v309 = vpack.c.b16 %v289, %v287
      %v310 = vpack.c.b16 %v290, %v288
      %v363 = vunpack.c.l.b16 %v192
      %v364 = vunpack.c.l.b16 %v193
      %v365 = vunpack.c.l.b16 %v194
      %v366 = vunpack.c.l.b16 %v195
      %v367 = vunpack.c.l.b16 %v196
      %v368 = vunpack.c.l.b16 %v197
      %v369 = vunpack.c.l.b16 %v198
      %v370 = vunpack.c.l.b16 %v199
      %v371 = vunpack.c.l.b16 %v200
      %v372 = vunpack.c.l.b16 %v201
      %v373 = vunpack.c.l.b16 %v202
      %v374 = vunpack.c.l.b16 %v203
      %v375 = vunpack.c.l.b16 %v204
      %v376 = vunpack.c.l.b16 %v205
      %v377 = vunpack.c.l.b16 %v206
      %v378 = vunpack.c.l.b16 %v207
      %v379 = vunpack.c.l.b16 %v208
      %v380 = vunpack.c.l.b16 %v209
      %v381 = vunpack.c.l.b16 %v210
      %v382 = vunpack.c.l.b16 %v211
      %v383 = vunpack.c.l.b16 %v212
      %v384 = vunpack.c.l.b16 %v213
      %v385 = vunpack.c.l.b16 %v214
      %v386 = vunpack.c.l.b16 %v215
      %v387 = vunpack.c.l.b16 %v216
      %v388 = vunpack.c.l.b16 %v217
      %v389 = vunpack.c.l.b16 %v218
      %v390 = vunpack.c.l.b16 %v219
      %v391 = vunpack.c.l.b16 %v220
      %v392 = vunpack.c.l.b16 %v221
      %v393 = vunpack.c.l.b16 %v222
      %v394 = vunpack.c.l.b16 %v223
      %v395 = vpack.c.b16 %v364, %v363
      %v396 = vpack.c.b16 %v366, %v365
      %v397 = vpack.c.b16 %v368, %v367
      %v398 = vpack.c.b16 %v370, %v369
      %v399 = vpack.c.b16 %v372, %v371
      %v400 = vpack.c.b16 %v374, %v373
      %v401 = vpack.c.b16 %v376, %v375
      %v402 = vpack.c.b16 %v378, %v377
      %v403 = vpack.c.b16 %v380, %v379
      %v404 = vpack.c.b16 %v382, %v381
      %v405 = vpack.c.b16 %v384, %v383
      %v406 = vpack.c.b16 %v386, %v385
      %v407 = vpack.c.b16 %v388, %v387
      %v408 = vpack.c.b16 %v390, %v389
      %v409 = vpack.c.b16 %v392, %v391
      %v410 = vpack.c.b16 %v394, %v393
      %427 = vmatprep.subr.bf16.mxu0 0
      %428 = vmatpush1.bf16.msra.mxu0 %v402
      %429 = vmatprep.subr.bf16.mxu0 0
      %430 = vmatpush1.bf16.msra.mxu0 %v401
      %431 = vmatprep.subr.bf16.mxu0 0
      %432 = vmatpush1.bf16.msra.mxu0 %v400
      %433 = vmatprep.subr.bf16.mxu0 0
      %434 = vmatpush1.bf16.msra.mxu0 %v399
      %435 = vmatprep.subr.bf16.mxu0 0
      %436 = vmatpush1.bf16.msra.mxu0 %v398
      %437 = vmatprep.subr.bf16.mxu0 0
      %438 = vmatpush1.bf16.msra.mxu0 %v397
      %439 = vmatprep.subr.bf16.mxu0 0
      %440 = vmatpush1.bf16.msra.mxu0 %v396
      %441 = vmatprep.subr.bf16.mxu0 0
      %442 = vmatpush1.bf16.msra.mxu0 %v395
      %443 = vmatprep.subr.bf16.mxu0 0
      %444 = vmatpush2.bf16.msra.mxu0 %v410
      %445 = vmatprep.subr.bf16.mxu0 0
      %446 = vmatpush2.bf16.msra.mxu0 %v409
      %447 = vmatprep.subr.bf16.mxu0 0
      %448 = vmatpush2.bf16.msra.mxu0 %v408
      %449 = vmatprep.subr.bf16.mxu0 0
      %450 = vmatpush2.bf16.msra.mxu0 %v407
      %451 = vmatprep.subr.bf16.mxu0 0
      %452 = vmatpush2.bf16.msra.mxu0 %v406
      %453 = vmatprep.subr.bf16.mxu0 0
      %454 = vmatpush2.bf16.msra.mxu0 %v405
      %455 = vmatprep.subr.bf16.mxu0 0
      %456 = vmatpush2.bf16.msra.mxu0 %v404
      %457 = vmatprep.subr.bf16.mxu0 0
      %458 = vmatpush2.bf16.msra.mxu0 %v403
      %459 = vmatprep.mubr.bf16.mxu0 %v292
      %460 = vmatmul.mubr.bf16.gmra.mxu0 %v291
      %v461 = vpop.f32.mrf.mxu0
      %v462 = vadd.f32 %v229, %v461
      %v463 = vpop.f32.mrf.mxu0
      %v464 = vpop.f32.mrf.mxu0
      %v465 = vadd.f32 %v229, %v464
      %v466 = vpop.f32.mrf.mxu0
      %467 = vmatprep.mubr.bf16.mxu0 %v294
      %468 = vmatmul.mubr.bf16.gmra.mxu0 %v293
      %v469 = vpop.f32.mrf.mxu0
      %v470 = vadd.f32 %v229, %v469
      %v471 = vpop.f32.mrf.mxu0
      %v472 = vpop.f32.mrf.mxu0
      %v473 = vadd.f32 %v229, %v472
      %v474 = vpop.f32.mrf.mxu0
      %475 = vmatprep.mubr.bf16.mxu0 %v296
      %476 = vmatmul.mubr.bf16.gmra.mxu0 %v295
      %v477 = vpop.f32.mrf.mxu0
      %v478 = vadd.f32 %v229, %v477
      %v479 = vpop.f32.mrf.mxu0
      %v480 = vpop.f32.mrf.mxu0
      %v481 = vadd.f32 %v229, %v480
      %v482 = vpop.f32.mrf.mxu0
      %483 = vmatprep.mubr.bf16.mxu0 %v298
      %484 = vmatmul.mubr.bf16.gmra.mxu0 %v297
      %v485 = vpop.f32.mrf.mxu0
      %v486 = vadd.f32 %v229, %v485
      %v487 = vpop.f32.mrf.mxu0
      %v488 = vpop.f32.mrf.mxu0
      %v489 = vadd.f32 %v229, %v488
      %v490 = vpop.f32.mrf.mxu0
      %491 = vmatprep.mubr.bf16.mxu0 %v300
      %492 = vmatmul.mubr.bf16.gmra.mxu0 %v299
      %v493 = vpop.f32.mrf.mxu0
      %v494 = vadd.f32 %v229, %v493
      %v495 = vpop.f32.mrf.mxu0
      %v496 = vpop.f32.mrf.mxu0
      %v497 = vadd.f32 %v229, %v496
      %v498 = vpop.f32.mrf.mxu0
      %499 = vmatprep.mubr.bf16.mxu0 %v302
      %500 = vmatmul.mubr.bf16.gmra.mxu0 %v301
      %v501 = vpop.f32.mrf.mxu0
      %v502 = vadd.f32 %v229, %v501
      %v503 = vpop.f32.mrf.mxu0
      %v504 = vpop.f32.mrf.mxu0
      %v505 = vadd.f32 %v229, %v504
      %v506 = vpop.f32.mrf.mxu0
      %507 = vmatprep.mubr.bf16.mxu0 %v304
      %508 = vmatmul.mubr.bf16.gmra.mxu0 %v303
      %v509 = vpop.f32.mrf.mxu0
      %v510 = vadd.f32 %v229, %v509
      %v511 = vpop.f32.mrf.mxu0
      %v512 = vpop.f32.mrf.mxu0
      %v513 = vadd.f32 %v229, %v512
      %v514 = vpop.f32.mrf.mxu0
      %515 = vmatprep.mubr.bf16.mxu0 %v306
      %516 = vmatmul.mubr.bf16.gmra.mxu0 %v305
      %v517 = vpop.f32.mrf.mxu0
      %v518 = vadd.f32 %v229, %v517
      %v519 = vpop.f32.mrf.mxu0
      %v520 = vpop.f32.mrf.mxu0
      %v521 = vadd.f32 %v229, %v520
      %v522 = vpop.f32.mrf.mxu0
      %523 = vmatprep.mubr.bf16.mxu0 %v308
      %524 = vmatmul.mubr.bf16.gmra.mxu0 %v307
      %v525 = vpop.f32.mrf.mxu0
      %v526 = vadd.f32 %v229, %v525
      %v527 = vpop.f32.mrf.mxu0
      %v528 = vpop.f32.mrf.mxu0
      %v529 = vadd.f32 %v229, %v528
      %v530 = vpop.f32.mrf.mxu0
      %531 = vmatprep.mubr.bf16.mxu0 %v310
      %532 = vmatmul.mubr.bf16.gmra.mxu0 %v309
      %v533 = vpop.f32.mrf.mxu0
      %v534 = vadd.f32 %v229, %v533
      %v535 = vpop.f32.mrf.mxu0
      %v536 = vpop.f32.mrf.mxu0
      %v537 = vadd.f32 %v229, %v536
      %v538 = vpop.f32.mrf.mxu0
      %539 = vdwg.mxu0
      %v540 = vmax.f32 %v462, 0.0
      %v541 = vmax.f32 %v465, 0.0
      %v542 = vmax.f32 %v470, 0.0
      %v543 = vmax.f32 %v473, 0.0
      %v544 = vmax.f32 %v478, 0.0
      %v545 = vmax.f32 %v481, 0.0
      %v546 = vmax.f32 %v486, 0.0
      %v547 = vmax.f32 %v489, 0.0
      %v548 = vmax.f32 %v494, 0.0
      %v549 = vmax.f32 %v497, 0.0
      %v550 = vmax.f32 %v502, 0.0
      %v551 = vmax.f32 %v505, 0.0
      %v552 = vmax.f32 %v510, 0.0
      %v553 = vmax.f32 %v513, 0.0
      %v554 = vmax.f32 %v518, 0.0
      %v555 = vmax.f32 %v521, 0.0
      %v556 = vmax.f32 %v526, 0.0
      %v557 = vmax.f32 %v529, 0.0
      %v558 = vmax.f32 %v534, 0.0
      %v559 = vmax.f32 %v537, 0.0
      %v560 = vmax.f32 %v540, %v545
      %v561 = vmax.f32 %v541, %v546
      %v562 = vmax.f32 %v542, %v547
      %v563 = vmax.f32 %v543, %v548
      %v564 = vmax.f32 %v544, %v549
      %v565 = vmax.f32 %v550, %v555
      %v566 = vmax.f32 %v551, %v556
      %v567 = vmax.f32 %v552, %v557
      %v568 = vmax.f32 %v553, %v558
      %v569 = vmax.f32 %v554, %v559
      %v570 = vmax.f32 %v560, %v565
      %v571 = vmax.f32 %v561, %v566
      %v572 = vmax.f32 %v562, %v567
      %v573 = vmax.f32 %v563, %v568
      %v574 = vmax.f32 %v564, %v569
      %575 = vst [vmem:[%s170] sm:$0xff] %v570
      %576 = vst [vmem:[%s170 + $0x8] sm:$0xff] %v571
      %577 = vst [vmem:[%s170 + $0x10] sm:$0xff] %v572
      %578 = vst [vmem:[%s170 + $0x18] sm:$0xff] %v573
      %579 = vst [vmem:[%s170 + $0x20] sm:$0xff] %v574
      %p580 = scmp.lt.s32.totalorder %s14, 1
      %s581 = scalar_select %p580, %s14, 1
      %s582 = smul.addr %s581, 5
      %s583 = smul.addr %s582, 8
      %s584 = scalar_lea.vmem %s3, %s583
      // Predicated region
      $region33: #{conv_2d_forward.1} parent=31 // pred_check
        %p585 = pneg %p100
      $region34: #{conv_2d_forward.1} parent=31 // pred_check_branch
        %587 = sbr.rel (%p585) target = $region36
      $region35: #{conv_2d_forward.1} parent=31 // pred_region
        _
      $region36: #{conv_2d_forward.1} parent=31 // pred_fallthru
        _
    $region32: #{conv_2d_forward.1} parent=5 // pred_fallthru
      _
    %p588 = scmp.le.s32.totalorder 2, %s9
    // Predicated region
    $region37: #{conv_2d_forward.1} parent=5 // pred_check
      %p589 = pneg %p588
    $region38: #{conv_2d_forward.1} parent=5 // pred_check_branch
      %591 = sbr.rel (%p589) target = $region40
    $region39: #{conv_2d_forward.1} parent=5 // pred_region
      %s592 = ssub.s32 %s9, 2
      // Predicated region
      $region41: #{conv_2d_forward.1} parent=39 // pred_check
        %p593 = pneg %p106
      $region42: #{conv_2d_forward.1} parent=39 // pred_check_branch
        %595 = sbr.rel (%p593) target = $region44
      $region43: #{conv_2d_forward.1} parent=39 // pred_region
        %p596 = scmp.lt.s32.totalorder %s15, 1
        %s597 = scalar_select %p596, %s15, 1
        %s598 = smul.addr %s597, 5
        %s599 = smul.addr %s598, 8
        %s600 = scalar_lea.vmem %s3, %s599
      $region44: #{conv_2d_forward.1} parent=39 // pred_fallthru
        _
    $region40: #{conv_2d_forward.1} parent=5 // pred_fallthru
      _
  $region6: #{conv_2d_forward.1} parent=0 // loop_footer
    %s13 = sadd.s32 1, %s9
  $region7: #{conv_2d_forward.1} parent=0 // loop_footer_branch
    %8 = sbr.rel target = $region3
  $region8: #{conv_2d_forward.1} parent=0 // loop_exit
    _

</llo_original>
